<compile_context>
chip_gen: v7x
topology: tpu7x:2x2x1
jax: 0.10.0
libtpu: 0.0.40
codegen_flags: <defaults>
</compile_context>

<pallas_src>
import jax
import jax.numpy as jnp
from jax.experimental import pallas as pl
from jax.experimental.pallas import tpu as pltpu


def _qvalue_kernel(s_ref, a_ref, w1s_ref, w1a_ref, b1_ref,
                   w2_ref, b2_ref, w3_ref, b3_ref, o_ref):
    # s_ref: [TB, S], a_ref: [TB, A]  (one batch tile, in VMEM)
    s = s_ref[...]
    a = a_ref[...]

    # fc1 on the implicit concat: [s|a] @ W1 == s @ W1[:S] + a @ W1[S:]
    h1 = (jnp.dot(s, w1s_ref[...], preferred_element_type=jnp.float32)
          + jnp.dot(a, w1a_ref[...], preferred_element_type=jnp.float32)
          + b1_ref[...])
    h1 = jnp.maximum(h1, 0.0)

    # fc2 + ReLU
    h2 = jnp.dot(h1, w2_ref[...], preferred_element_type=jnp.float32) + b2_ref[...]
    h2 = jnp.maximum(h2, 0.0)

    # fc_out (output width 1):  w3_row [1,H]  contracted against  h2 [TB,H]
    # along H -> result is a lane-dense (1, TB) row (avoids a (TB,1) column
    # store, which would be 4-byte sublane-strided / masked).
    q = jax.lax.dot_general(
        w3_ref[...], h2,
        dimension_numbers=(((1,), (1,)), ((), ())),
        preferred_element_type=jnp.float32)          # [1, TB]
    o_ref[...] = q + b3_ref[...]


def _round_up(x, m):
    return (x + m - 1) // m * m


def qvalue_forward(state, action, params):
    """Pallas implementation of QValueNet.forward.

    state:  [B, state_dim]  float32
    action: [B, action_dim] float32
    returns [B, 1] float32
    """
    w1, b1, w2, b2, w3, b3 = params
    B, S = state.shape
    A = action.shape[1]
    H = w1.shape[1]

    # Split fc1 weight so the concat never materializes (tiny, trace-time slice).
    w1_s = w1[:S]              # [S, H]
    w1_a = w1[S:]              # [A, H]
    w3_row = w3.reshape(1, H)  # [1, H] row for the transposed fc_out matmul

    # Batch tiling: TB rows per grid step (multiple of 8 sublanes), batch
    # padded to a multiple of TB and sliced back afterwards.
    TB = min(1024, _round_up(B, 8))
    Bp = _round_up(B, TB)
    if Bp != B:
        pad = Bp - B
        state = jnp.pad(state, ((0, pad), (0, 0)))
        action = jnp.pad(action, ((0, pad), (0, 0)))
    nb = Bp // TB

    flops = 2 * Bp * ((S + A) * H + H * H + H)
    bytes_accessed = 4 * (Bp * (S + A)          # inputs
                          + (S + A) * H + H     # fc1
                          + H * H + H           # fc2
                          + H + 1               # fc_out
                          + Bp)                 # output

    out_row = pl.pallas_call(
        _qvalue_kernel,
        out_shape=jax.ShapeDtypeStruct((1, Bp), jnp.float32),
        grid=(nb,),
        in_specs=[
            pl.BlockSpec((TB, S), lambda i: (i, 0)),   # state tile
            pl.BlockSpec((TB, A), lambda i: (i, 0)),   # action tile
            pl.BlockSpec((S, H), lambda i: (0, 0)),    # w1[:S]  (resident)
            pl.BlockSpec((A, H), lambda i: (0, 0)),    # w1[S:]  (resident)
            pl.BlockSpec((1, H), lambda i: (0, 0)),    # b1
            pl.BlockSpec((H, H), lambda i: (0, 0)),    # w2
            pl.BlockSpec((1, H), lambda i: (0, 0)),    # b2
            pl.BlockSpec((1, H), lambda i: (0, 0)),    # w3 row
            pl.BlockSpec((1, 1), lambda i: (0, 0)),    # b3
        ],
        out_specs=pl.BlockSpec((1, TB), lambda i: (0, i)),   # lane-dense row
        compiler_params=pltpu.CompilerParams(
            dimension_semantics=("parallel",)),
        cost_estimate=pl.CostEstimate(
            flops=flops, transcendentals=0, bytes_accessed=bytes_accessed),
    )(state, action, w1_s, w1_a, b1, w2, b2, w3_row, b3)

    # (1, Bp) row-major == (Bp, 1) row-major: pure bitcast + cheap slice.
    return out_row.reshape(Bp, 1)[:B]


def init_params(key, state_dim, hidden_dim, action_dim):
    """Deterministic init mimicking nn.Linear default (U(-1/sqrt(fan_in), +))."""
    ks = jax.random.split(key, 6)
    in1 = state_dim + action_dim

    def u(k, shape, fan_in):
        bound = 1.0 / jnp.sqrt(fan_in)
        return jax.random.uniform(k, shape, jnp.float32, -bound, bound)

    # Weights stored as [in, out] so the kernel does x @ W (PyTorch stores [out, in]).
    w1 = u(ks[0], (in1, hidden_dim), in1)
    b1 = u(ks[1], (1, hidden_dim), in1)
    w2 = u(ks[2], (hidden_dim, hidden_dim), hidden_dim)
    b2 = u(ks[3], (1, hidden_dim), hidden_dim)
    w3 = u(ks[4], (hidden_dim, 1), hidden_dim)
    b3 = u(ks[5], (1, 1), hidden_dim)
    return (w1, b1, w2, b2, w3, b3)


def qvalue_reference(state, action, params):
    """Pure-JAX reference for correctness checking."""
    w1, b1, w2, b2, w3, b3 = params
    x = jnp.concatenate([state, action], axis=1)
    h1 = jax.nn.relu(x @ w1 + b1)
    h2 = jax.nn.relu(h1 @ w2 + b2)
    return h2 @ w3 + b3


if __name__ == "__main__":
    state_dim, hidden_dim, action_dim = 12, 32, 4

    key = jax.random.PRNGKey(0)
    k_params, k_state, k_action = jax.random.split(key, 3)
    params = init_params(k_params, state_dim, hidden_dim, action_dim)

    # batch = 8 (tile-aligned) and batch = 10 (exercises the pad/slice path).
    for batch in (8, 10):
        ks, ka = jax.random.split(jax.random.fold_in(k_state, batch))
        state = jax.random.normal(ks, (batch, state_dim), jnp.float32)
        action = jax.random.normal(ka, (batch, action_dim), jnp.float32)

        out = qvalue_forward(state, action, params)
        out = jax.block_until_ready(out)

        ref = qvalue_reference(state, action, params)
        assert out.shape == (batch, 1)
        assert jnp.allclose(out, ref, atol=1e-5, rtol=1e-5), \
            f"mismatch vs JAX reference at batch={batch}"

    print("KERNEL_OK")
</pallas_src>

<mosaic_0001>
module attributes {stable_mosaic.version = 11 : i64} {
  func.func @_qvalue_kernel(%arg0: i32, %arg1: memref<8x12xf32, #tpu.memory_space<vmem>>, %arg2: memref<8x4xf32, #tpu.memory_space<vmem>>, %arg3: memref<12x32xf32, #tpu.memory_space<vmem>>, %arg4: memref<4x32xf32, #tpu.memory_space<vmem>>, %arg5: memref<1x32xf32, #tpu.memory_space<vmem>>, %arg6: memref<32x32xf32, #tpu.memory_space<vmem>>, %arg7: memref<1x32xf32, #tpu.memory_space<vmem>>, %arg8: memref<1x32xf32, #tpu.memory_space<vmem>>, %arg9: memref<1x1xf32, #tpu.memory_space<vmem>>, %arg10: memref<1x8xf32, #tpu.memory_space<vmem>>) attributes {dimension_semantics = [#tpu.dimension_semantics<parallel>], iteration_bounds = array<i64: 1>, scalar_prefetch = 0 : i64, scratch_operands = 0 : i64, tpu.core_type = #tpu.core_type<tc>, window_params = [{transform_indices = @transform_0, window_bounds = array<i64: 8, 12>}, {transform_indices = @transform_1, window_bounds = array<i64: 8, 4>}, {pipeline_mode = #tpu.pipeline_mode<synchronous>, transform_indices = @transform_2, window_bounds = array<i64: 12, 32>}, {pipeline_mode = #tpu.pipeline_mode<synchronous>, transform_indices = @transform_3, window_bounds = array<i64: 4, 32>}, {pipeline_mode = #tpu.pipeline_mode<synchronous>, transform_indices = @transform_4, window_bounds = array<i64: 1, 32>}, {pipeline_mode = #tpu.pipeline_mode<synchronous>, transform_indices = @transform_5, window_bounds = array<i64: 32, 32>}, {pipeline_mode = #tpu.pipeline_mode<synchronous>, transform_indices = @transform_6, window_bounds = array<i64: 1, 32>}, {pipeline_mode = #tpu.pipeline_mode<synchronous>, transform_indices = @transform_7, window_bounds = array<i64: 1, 32>}, {pipeline_mode = #tpu.pipeline_mode<synchronous>, transform_indices = @transform_8, window_bounds = array<i64: 1, 1>}, {transform_indices = @transform_9, window_bounds = array<i64: 1, 8>}]} {
    %c0 = arith.constant 0 : index
    %c0_0 = arith.constant 0 : index
    %0 = vector.load %arg1[%c0, %c0_0] : memref<8x12xf32, #tpu.memory_space<vmem>>, vector<8x12xf32>
    %c0_1 = arith.constant 0 : index
    %c0_2 = arith.constant 0 : index
    %1 = vector.load %arg2[%c0_1, %c0_2] : memref<8x4xf32, #tpu.memory_space<vmem>>, vector<8x4xf32>
    %c0_3 = arith.constant 0 : index
    %c0_4 = arith.constant 0 : index
    %2 = vector.load %arg3[%c0_3, %c0_4] : memref<12x32xf32, #tpu.memory_space<vmem>>, vector<12x32xf32>
    %cst = arith.constant dense<0.000000e+00> : vector<8x32xf32>
    %3 = tpu.matmul %0, %2, %cst {dimension_numbers = #tpu.dot_dimension_numbers<[1], [0], [0], [1], [0, 0, 1, 1], [], []>} : vector<8x12xf32>, vector<12x32xf32>, vector<8x32xf32> -> vector<8x32xf32>
    %c0_5 = arith.constant 0 : index
    %c0_6 = arith.constant 0 : index
    %4 = vector.load %arg4[%c0_5, %c0_6] : memref<4x32xf32, #tpu.memory_space<vmem>>, vector<4x32xf32>
    %cst_7 = arith.constant dense<0.000000e+00> : vector<8x32xf32>
    %5 = tpu.matmul %1, %4, %cst_7 {dimension_numbers = #tpu.dot_dimension_numbers<[1], [0], [0], [1], [0, 0, 1, 1], [], []>} : vector<8x4xf32>, vector<4x32xf32>, vector<8x32xf32> -> vector<8x32xf32>
    %6 = arith.addf %3, %5 : vector<8x32xf32>
    %c0_8 = arith.constant 0 : index
    %c0_9 = arith.constant 0 : index
    %7 = vector.load %arg5[%c0_8, %c0_9] : memref<1x32xf32, #tpu.memory_space<vmem>>, vector<1x32xf32>
    %8 = vector.broadcast %7 : vector<1x32xf32> to vector<8x32xf32>
    %9 = arith.addf %6, %8 : vector<8x32xf32>
    %cst_10 = arith.constant 0.000000e+00 : f32
    %10 = vector.broadcast %cst_10 : f32 to vector<8x32xf32>
    %11 = arith.maximumf %9, %10 : vector<8x32xf32>
    %c0_11 = arith.constant 0 : index
    %c0_12 = arith.constant 0 : index
    %12 = vector.load %arg6[%c0_11, %c0_12] : memref<32x32xf32, #tpu.memory_space<vmem>>, vector<32x32xf32>
    %cst_13 = arith.constant dense<0.000000e+00> : vector<8x32xf32>
    %13 = tpu.matmul %11, %12, %cst_13 {dimension_numbers = #tpu.dot_dimension_numbers<[1], [0], [0], [1], [0, 0, 1, 1], [], []>} : vector<8x32xf32>, vector<32x32xf32>, vector<8x32xf32> -> vector<8x32xf32>
    %c0_14 = arith.constant 0 : index
    %c0_15 = arith.constant 0 : index
    %14 = vector.load %arg7[%c0_14, %c0_15] : memref<1x32xf32, #tpu.memory_space<vmem>>, vector<1x32xf32>
    %15 = vector.broadcast %14 : vector<1x32xf32> to vector<8x32xf32>
    %16 = arith.addf %13, %15 : vector<8x32xf32>
    %cst_16 = arith.constant 0.000000e+00 : f32
    %17 = vector.broadcast %cst_16 : f32 to vector<8x32xf32>
    %18 = arith.maximumf %16, %17 : vector<8x32xf32>
    %c0_17 = arith.constant 0 : index
    %c0_18 = arith.constant 0 : index
    %19 = vector.load %arg8[%c0_17, %c0_18] : memref<1x32xf32, #tpu.memory_space<vmem>>, vector<1x32xf32>
    %cst_19 = arith.constant dense<0.000000e+00> : vector<1x8xf32>
    %20 = tpu.matmul %19, %18, %cst_19 {dimension_numbers = #tpu.dot_dimension_numbers<[1], [1], [0], [0], [0, 0, 1, 0], [], []>} : vector<1x32xf32>, vector<8x32xf32>, vector<1x8xf32> -> vector<1x8xf32>
    %c0_20 = arith.constant 0 : index
    %c0_21 = arith.constant 0 : index
    %21 = vector.load %arg9[%c0_20, %c0_21] : memref<1x1xf32, #tpu.memory_space<vmem>>, vector<1x1xf32>
    %22 = vector.broadcast %21 : vector<1x1xf32> to vector<1x8xf32>
    %23 = arith.addf %20, %22 : vector<1x8xf32>
    %c0_22 = arith.constant 0 : index
    %c0_23 = arith.constant 0 : index
    %24 = vector.load %arg10[%c0_22, %c0_23] : memref<1x8xf32, #tpu.memory_space<vmem>>, vector<1x8xf32>
    tpu.vector_store %arg10[%c0_22, %c0_23], %23 {strides = array<i32>} : memref<1x8xf32, #tpu.memory_space<vmem>>, vector<1x8xf32>,
    return
  }
  func.func @transform_0(%arg0: i32) -> (i32, i32) {
    %c0_i32 = arith.constant 0 : i32
    %c0_i32_0 = arith.constant 0 : i32
    return %arg0, %c0_i32 : i32, i32
  }
  func.func @transform_1(%arg0: i32) -> (i32, i32) {
    %c0_i32 = arith.constant 0 : i32
    %c0_i32_0 = arith.constant 0 : i32
    return %arg0, %c0_i32 : i32, i32
  }
  func.func @transform_2(%arg0: i32) -> (i32, i32) {
    %c0_i32 = arith.constant 0 : i32
    %c0_i32_0 = arith.constant 0 : i32
    %c0_i32_1 = arith.constant 0 : i32
    return %c0_i32, %c0_i32_0 : i32, i32
  }
  func.func @transform_3(%arg0: i32) -> (i32, i32) {
    %c0_i32 = arith.constant 0 : i32
    %c0_i32_0 = arith.constant 0 : i32
    %c0_i32_1 = arith.constant 0 : i32
    return %c0_i32, %c0_i32_0 : i32, i32
  }
  func.func @transform_4(%arg0: i32) -> (i32, i32) {
    %c0_i32 = arith.constant 0 : i32
    %c0_i32_0 = arith.constant 0 : i32
    %c0_i32_1 = arith.constant 0 : i32
    return %c0_i32, %c0_i32_0 : i32, i32
  }
  func.func @transform_5(%arg0: i32) -> (i32, i32) {
    %c0_i32 = arith.constant 0 : i32
    %c0_i32_0 = arith.constant 0 : i32
    %c0_i32_1 = arith.constant 0 : i32
    return %c0_i32, %c0_i32_0 : i32, i32
  }
  func.func @transform_6(%arg0: i32) -> (i32, i32) {
    %c0_i32 = arith.constant 0 : i32
    %c0_i32_0 = arith.constant 0 : i32
    %c0_i32_1 = arith.constant 0 : i32
    return %c0_i32, %c0_i32_0 : i32, i32
  }
  func.func @transform_7(%arg0: i32) -> (i32, i32) {
    %c0_i32 = arith.constant 0 : i32
    %c0_i32_0 = arith.constant 0 : i32
    %c0_i32_1 = arith.constant 0 : i32
    return %c0_i32, %c0_i32_0 : i32, i32
  }
  func.func @transform_8(%arg0: i32) -> (i32, i32) {
    %c0_i32 = arith.constant 0 : i32
    %c0_i32_0 = arith.constant 0 : i32
    %c0_i32_1 = arith.constant 0 : i32
    return %c0_i32, %c0_i32_0 : i32, i32
  }
  func.func @transform_9(%arg0: i32) -> (i32, i32) {
    %c0_i32 = arith.constant 0 : i32
    %c0_i32_0 = arith.constant 0 : i32
    return %c0_i32, %arg0 : i32, i32
  }
}

</mosaic_0001>

<llo_original>
// kernel: tpu_custom_call.1
$region0: #{tpu_custom_call.1}
  #allocation0 [shape = 'u32[]', space=smem, size = 0x4, offset = 0x4, fixed_abs, tag = 'smem constant byte address 0x4 - core index']
  #allocation1 [shape = 'u32[144,128]{1,0:T(1,128)}', space=vmem, size = 0x12000, scoped, tag = 'internal scratch']
  #allocation2 [shape = 'f32[1,1]{1,0:T(1,128)S(1)}', space=vmem, size = 0x200, scoped, tag = 'scoped memory for tpu_custom_call.1']
  %s0 = inlined_call_operand.hbm [shape: f32[8,12], index: 0, kind: input, shape index: {}]
  %s1 = inlined_call_operand.vmem [shape: f32[8,4], index: 1, kind: input, shape index: {}]
  %s2 = inlined_call_operand.hbm [shape: f32[12,32], index: 2, kind: input, shape index: {}]
  %s3 = inlined_call_operand.hbm [shape: f32[4,32], index: 3, kind: input, shape index: {}]
  %s4 = inlined_call_operand.vmem [shape: f32[1,32], index: 4, kind: input, shape index: {}]
  %s5 = inlined_call_operand.vmem [shape: f32[32,32], index: 5, kind: input, shape index: {}]
  %s6 = inlined_call_operand.vmem [shape: f32[1,32], index: 6, kind: input, shape index: {}]
  %s7 = inlined_call_operand.vmem [shape: f32[1,32], index: 7, kind: input, shape index: {}]
  %s8 = inlined_call_operand.<no memory space> [shape: f32[1,1], index: 8, kind: input, shape index: {}]
  %s9 = inlined_call_operand.hbm [shape: f32[1,8], index: 9, kind: output, shape index: {}]
  %s10 = sld [smem:[#allocation0]]
  $region58: #{tpu_custom_call.1} parent=0
    _
  %s12 = ssub.s32 1, %s10
  %s13 = scalar_select 0, %s12, %s10
  %v14 = vstv %s8
  %15 = vst [vmem:[#allocation2] sm:$0x1] %v14
  $region1: #{tpu_custom_call.1} parent=0
    #allocation3 [shape = 'u8[4096]{0}', space=vmem, size = 0x1000, scoped, tag = 'input window, operand 0, single buffered']
    #allocation4 [shape = 's32[1]{0}', space=sflag, size = 0x4, scoped, tag = 'scoped memory for tpu_custom_call.1']
    #allocation5 [shape = 's32[1]{0}', space=sflag, size = 0x4, scoped, tag = 'scoped memory for tpu_custom_call.1']
    #allocation6 [shape = 'u8[8192]{0}', space=vmem, size = 0x2000, scoped, tag = 'input window, operand 2, single buffered']
    #allocation7 [shape = 's32[1]{0}', space=sflag, size = 0x4, scoped, tag = 'scoped memory for tpu_custom_call.1']
    #allocation8 [shape = 'u8[2048]{0}', space=vmem, size = 0x800, scoped, tag = 'input window, operand 3, single buffered']
    #allocation9 [shape = 'u8[512]{0}', space=vmem, size = 0x400, scoped, tag = 'output window, operand 0, single buffered']
    %16 = vsyncpa [#allocation4], 0
    %17 = vsyncpa [#allocation7], 0
    %18 = vsyncpa [#allocation5], 0
    // Predicated region
    $region2: #{tpu_custom_call.1} parent=1 // pred_check
      _
    $region3: #{tpu_custom_call.1} parent=1 // pred_check_branch
      %20 = sbr.rel (0) target = $region5
    $region4: #{tpu_custom_call.1} parent=1 // pred_region
      %s22 = ssub.s32 128, 128
      %23 = vsyncadd [#allocation4], %s22
      %s25 = sshll.u32 [#allocation3], 4
      %s26 = int_to_ptr.vmem [resolvable:$true] %s25
      %28 = dma.hbm_to_vmem [thread:$0]  %s0, 128, %s26, [#allocation4]
    $region5: #{tpu_custom_call.1} parent=1 // pred_fallthru
      _
    // Predicated region
    $region6: #{tpu_custom_call.1} parent=1 // pred_check
      _
    $region7: #{tpu_custom_call.1} parent=1 // pred_check_branch
      %30 = sbr.rel (0) target = $region9
    $region8: #{tpu_custom_call.1} parent=1 // pred_region
      _
    $region9: #{tpu_custom_call.1} parent=1 // pred_fallthru
      _
    // Predicated region
    $region10: #{tpu_custom_call.1} parent=1 // pred_check
      _
    $region11: #{tpu_custom_call.1} parent=1 // pred_check_branch
      %32 = sbr.rel (0) target = $region13
    $region12: #{tpu_custom_call.1} parent=1 // pred_region
      %s34 = ssub.s32 256, 256
      %35 = vsyncadd [#allocation7], %s34
      %s36 = sshll.u32 [#allocation6], 4
      %s37 = int_to_ptr.vmem [resolvable:$true] %s36
      %42 = dma.hbm_to_vmem [thread:$0]  %s2, 256, %s37, [#allocation7], 128, 128, 8
    $region13: #{tpu_custom_call.1} parent=1 // pred_fallthru
      _
    // Predicated region
    $region14: #{tpu_custom_call.1} parent=1 // pred_check
      _
    $region15: #{tpu_custom_call.1} parent=1 // pred_check_branch
      %44 = sbr.rel (0) target = $region17
    $region16: #{tpu_custom_call.1} parent=1 // pred_region
      %s46 = ssub.s32 64, 64
      %47 = vsyncadd [#allocation7], %s46
      %s49 = sshll.u32 [#allocation8], 4
      %s50 = int_to_ptr.vmem [resolvable:$true] %s49
      %52 = dma.hbm_to_vmem [thread:$0]  %s3, 64, %s50, [#allocation7]
    $region17: #{tpu_custom_call.1} parent=1 // pred_fallthru
      _
    // Predicated region
    $region18: #{tpu_custom_call.1} parent=1 // pred_check
      _
    $region19: #{tpu_custom_call.1} parent=1 // pred_check_branch
      %54 = sbr.rel (0) target = $region21
    $region20: #{tpu_custom_call.1} parent=1 // pred_region
      _
    $region21: #{tpu_custom_call.1} parent=1 // pred_fallthru
      _
    // Predicated region
    $region22: #{tpu_custom_call.1} parent=1 // pred_check
      _
    $region23: #{tpu_custom_call.1} parent=1 // pred_check_branch
      %56 = sbr.rel (0) target = $region25
    $region24: #{tpu_custom_call.1} parent=1 // pred_region
      _
    $region25: #{tpu_custom_call.1} parent=1 // pred_fallthru
      _
    // Predicated region
    $region26: #{tpu_custom_call.1} parent=1 // pred_check
      _
    $region27: #{tpu_custom_call.1} parent=1 // pred_check_branch
      %58 = sbr.rel (0) target = $region29
    $region28: #{tpu_custom_call.1} parent=1 // pred_region
      _
    $region29: #{tpu_custom_call.1} parent=1 // pred_fallthru
      _
    // Predicated region
    $region30: #{tpu_custom_call.1} parent=1 // pred_check
      _
    $region31: #{tpu_custom_call.1} parent=1 // pred_check_branch
      %60 = sbr.rel (0) target = $region33
    $region32: #{tpu_custom_call.1} parent=1 // pred_region
      _
    $region33: #{tpu_custom_call.1} parent=1 // pred_fallthru
      _
    // Predicated region
    $region34: #{tpu_custom_call.1} parent=1 // pred_check
      _
    $region35: #{tpu_custom_call.1} parent=1 // pred_check_branch
      %62 = sbr.rel (0) target = $region37
    $region36: #{tpu_custom_call.1} parent=1 // pred_region
      _
    $region37: #{tpu_custom_call.1} parent=1 // pred_fallthru
      _
    // Predicated region
    $region38: #{tpu_custom_call.1} parent=1 // pred_check
      _
    $region39: #{tpu_custom_call.1} parent=1 // pred_check_branch
      %64 = sbr.rel (0) target = $region41
    $region40: #{tpu_custom_call.1} parent=1 // pred_region
      %65 = dma.done [#allocation4], 128
    $region41: #{tpu_custom_call.1} parent=1 // pred_fallthru
      _
    // Predicated region
    $region42: #{tpu_custom_call.1} parent=1 // pred_check
      _
    $region43: #{tpu_custom_call.1} parent=1 // pred_check_branch
      %67 = sbr.rel (0) target = $region45
    $region44: #{tpu_custom_call.1} parent=1 // pred_region
      %68 = dma.done [#allocation7], 256
    $region45: #{tpu_custom_call.1} parent=1 // pred_fallthru
      _
    // Predicated region
    $region46: #{tpu_custom_call.1} parent=1 // pred_check
      _
    $region47: #{tpu_custom_call.1} parent=1 // pred_check_branch
      %70 = sbr.rel (0) target = $region49
    $region48: #{tpu_custom_call.1} parent=1 // pred_region
      %71 = dma.done [#allocation7], 64
    $region49: #{tpu_custom_call.1} parent=1 // pred_fallthru
      _
    %v72 = vld [vmem:[#allocation3] sm:$0xff]
    %v73 = vld [vmem:[%s1] sm:$0xff]
    %v74 = vld [vmem:[#allocation6] sm:$0xff]
    %v75 = vld [vmem:[#allocation6 + $0x8] sm:$0xf]
    %v76 = vld [vmem:[#allocation8] sm:$0xf]
    %vm77 = vcmask 31744
    %v79 = vsel %vm77, %v73, 0
    %vm81 = vcmask 1043456
    %v83 = vsel %vm81, %v76, 0
    %85 = vmatprep.subr.mxu0 0.0
    %86 = vmatpush1.msra.mxu0 %v83
    %87 = vmatprep.subr.mxu0 0.0
    %88 = vmatpush1.msra.mxu0 0.0
    %89 = vmatprep.subr.mxu0 0.0
    %90 = vmatpush1.msra.mxu0 0.0
    %91 = vmatprep.subr.mxu0 0.0
    %92 = vmatpush1.msra.mxu0 0.0
    %93 = vmatprep.subr.mxu0 0.0
    %94 = vmatpush1.msra.mxu0 0.0
    %95 = vmatprep.subr.mxu0 0.0
    %96 = vmatpush1.msra.mxu0 0.0
    %97 = vmatprep.subr.mxu0 0.0
    %98 = vmatpush1.msra.mxu0 0.0
    %99 = vmatprep.subr.mxu0 0.0
    %100 = vmatpush1.msra.mxu0 0.0
    %101 = vmatprep.subr.mxu0 0.0
    %102 = vmatpush1.msra.mxu0 0.0
    %103 = vmatprep.subr.mxu0 0.0
    %104 = vmatpush1.msra.mxu0 0.0
    %105 = vmatprep.subr.mxu0 0.0
    %106 = vmatpush1.msra.mxu0 0.0
    %107 = vmatprep.subr.mxu0 0.0
    %108 = vmatpush1.msra.mxu0 0.0
    %109 = vmatprep.subr.mxu0 0.0
    %110 = vmatpush1.msra.mxu0 0.0
    %111 = vmatprep.subr.mxu0 0.0
    %112 = vmatpush1.msra.mxu0 0.0
    %113 = vmatprep.subr.mxu0 0.0
    %114 = vmatpush1.msra.mxu0 0.0
    %115 = vmatprep.subr.mxu0 0.0
    %116 = vmatpush1.msra.mxu0 0.0
    %117 = vmatprep.subr.mxu0 0.0
    %118 = vmatpush1.msra.mxu0 0.0
    %119 = vmatprep.subr.mxu0 0.0
    %120 = vmatpush1.msra.mxu0 0.0
    %121 = vmatprep.subr.mxu0 0.0
    %122 = vmatpush1.msra.mxu0 0.0
    %123 = vmatprep.subr.mxu0 0.0
    %124 = vmatpush1.msra.mxu0 0.0
    %125 = vmatprep.subr.mxu0 0.0
    %126 = vmatpush1.msra.mxu0 0.0
    %127 = vmatprep.subr.mxu0 0.0
    %128 = vmatpush1.msra.mxu0 0.0
    %129 = vmatprep.subr.mxu0 0.0
    %130 = vmatpush1.msra.mxu0 0.0
    %131 = vmatprep.subr.mxu0 0.0
    %132 = vmatpush1.msra.mxu0 0.0
    %133 = vmatprep.subr.mxu0 0.0
    %134 = vmatpush1.msra.mxu0 0.0
    %135 = vmatprep.subr.mxu0 0.0
    %136 = vmatpush1.msra.mxu0 0.0
    %137 = vmatprep.subr.mxu0 0.0
    %138 = vmatpush1.msra.mxu0 0.0
    %139 = vmatprep.subr.mxu0 0.0
    %140 = vmatpush1.msra.mxu0 0.0
    %141 = vmatprep.subr.mxu0 0.0
    %142 = vmatpush1.msra.mxu0 0.0
    %143 = vmatprep.subr.mxu0 0.0
    %144 = vmatpush1.msra.mxu0 0.0
    %145 = vmatprep.subr.mxu0 0.0
    %146 = vmatpush1.msra.mxu0 0.0
    %147 = vmatprep.subr.mxu0 0.0
    %148 = vmatpush1.msra.mxu0 0.0
    %149 = vmatprep.mubr.f32.mxu0 0.0
    %150 = vmatmul.mubr.f32.gmra.mrb[0].mxu0 %v79
    %v151 = vpop.f32.mrb[0].mxu0
    %v152 = vadd.f32 0.0, %v151
    %v153 = vpop.f32.mrb[0].mxu0
    %154 = vdwg.mxu0
    %vm155 = vcmask 97280
    %v157 = vsel %vm155, %v72, 0
    %v160 = vsel %vm81, %v75, 0
    %162 = vmatprep.subr.mxu0 0.0
    %163 = vmatpush1.msra.mxu0 %v74
    %164 = vmatprep.subr.mxu0 0.0
    %165 = vmatpush1.msra.mxu0 %v160
    %166 = vmatprep.subr.mxu0 0.0
    %167 = vmatpush1.msra.mxu0 0.0
    %168 = vmatprep.subr.mxu0 0.0
    %169 = vmatpush1.msra.mxu0 0.0
    %170 = vmatprep.subr.mxu0 0.0
    %171 = vmatpush1.msra.mxu0 0.0
    %172 = vmatprep.subr.mxu0 0.0
    %173 = vmatpush1.msra.mxu0 0.0
    %174 = vmatprep.subr.mxu0 0.0
    %175 = vmatpush1.msra.mxu0 0.0
    %176 = vmatprep.subr.mxu0 0.0
    %177 = vmatpush1.msra.mxu0 0.0
    %178 = vmatprep.subr.mxu0 0.0
    %179 = vmatpush1.msra.mxu0 0.0
    %180 = vmatprep.subr.mxu0 0.0
    %181 = vmatpush1.msra.mxu0 0.0
    %182 = vmatprep.subr.mxu0 0.0
    %183 = vmatpush1.msra.mxu0 0.0
    %184 = vmatprep.subr.mxu0 0.0
    %185 = vmatpush1.msra.mxu0 0.0
    %186 = vmatprep.subr.mxu0 0.0
    %187 = vmatpush1.msra.mxu0 0.0
    %188 = vmatprep.subr.mxu0 0.0
    %189 = vmatpush1.msra.mxu0 0.0
    %190 = vmatprep.subr.mxu0 0.0
    %191 = vmatpush1.msra.mxu0 0.0
    %192 = vmatprep.subr.mxu0 0.0
    %193 = vmatpush1.msra.mxu0 0.0
    %194 = vmatprep.subr.mxu0 0.0
    %195 = vmatpush1.msra.mxu0 0.0
    %196 = vmatprep.subr.mxu0 0.0
    %197 = vmatpush1.msra.mxu0 0.0
    %198 = vmatprep.subr.mxu0 0.0
    %199 = vmatpush1.msra.mxu0 0.0
    %200 = vmatprep.subr.mxu0 0.0
    %201 = vmatpush1.msra.mxu0 0.0
    %202 = vmatprep.subr.mxu0 0.0
    %203 = vmatpush1.msra.mxu0 0.0
    %204 = vmatprep.subr.mxu0 0.0
    %205 = vmatpush1.msra.mxu0 0.0
    %206 = vmatprep.subr.mxu0 0.0
    %207 = vmatpush1.msra.mxu0 0.0
    %208 = vmatprep.subr.mxu0 0.0
    %209 = vmatpush1.msra.mxu0 0.0
    %210 = vmatprep.subr.mxu0 0.0
    %211 = vmatpush1.msra.mxu0 0.0
    %212 = vmatprep.subr.mxu0 0.0
    %213 = vmatpush1.msra.mxu0 0.0
    %214 = vmatprep.subr.mxu0 0.0
    %215 = vmatpush1.msra.mxu0 0.0
    %216 = vmatprep.subr.mxu0 0.0
    %217 = vmatpush1.msra.mxu0 0.0
    %218 = vmatprep.subr.mxu0 0.0
    %219 = vmatpush1.msra.mxu0 0.0
    %220 = vmatprep.subr.mxu0 0.0
    %221 = vmatpush1.msra.mxu0 0.0
    %222 = vmatprep.subr.mxu0 0.0
    %223 = vmatpush1.msra.mxu0 0.0
    %224 = vmatprep.subr.mxu0 0.0
    %225 = vmatpush1.msra.mxu0 0.0
    %226 = vmatprep.mubr.f32.mxu0 0.0
    %227 = vmatmul.mubr.f32.gmra.mrb[0].mxu0 %v157
    %v228 = vpop.f32.mrb[0].mxu0
    %v229 = vadd.f32 %v152, %v228
    %v230 = vpop.f32.mrb[0].mxu0
    %231 = vdwg.mxu0
    %v232 = vld [vmem:[%s4] sm:$0x1]
    %v234 = vlaneseq
    %v235 = vshrl.u32 %v234, 7
    %v236 = vsub.s32 0, %v235
    %v237 = vrot.slane %v232, %v236
    %v239 = vadd.f32 %v229, %v237
    %v240 = vmax.f32 %v239, 0.0
    %v241 = vld [vmem:[%s5] sm:$0xff]
    %v242 = vld [vmem:[%s5 + $0x8] sm:$0xff]
    %v243 = vld [vmem:[%s5 + $0x10] sm:$0xff]
    %v244 = vld [vmem:[%s5 + $0x18] sm:$0xff]
    %v245 = vld [vmem:[%s6] sm:$0x1]
    %v247 = vlaneseq
    %v248 = vshrl.u32 %v247, 7
    %v249 = vsub.s32 0, %v248
    %v250 = vrot.slane %v245, %v249
    %vm252 = vcmask 261120
    %v254 = vsel %vm252, %v240, 0
    %256 = vmatprep.subr.mxu0 0.0
    %257 = vmatpush1.msra.mxu0 %v241
    %258 = vmatprep.subr.mxu0 0.0
    %259 = vmatpush1.msra.mxu0 %v242
    %260 = vmatprep.subr.mxu0 0.0
    %261 = vmatpush1.msra.mxu0 %v243
    %262 = vmatprep.subr.mxu0 0.0
    %263 = vmatpush1.msra.mxu0 %v244
    %264 = vmatprep.subr.mxu0 0.0
    %265 = vmatpush1.msra.mxu0 0.0
    %266 = vmatprep.subr.mxu0 0.0
    %267 = vmatpush1.msra.mxu0 0.0
    %268 = vmatprep.subr.mxu0 0.0
    %269 = vmatpush1.msra.mxu0 0.0
    %270 = vmatprep.subr.mxu0 0.0
    %271 = vmatpush1.msra.mxu0 0.0
    %272 = vmatprep.subr.mxu0 0.0
    %273 = vmatpush1.msra.mxu0 0.0
    %274 = vmatprep.subr.mxu0 0.0
    %275 = vmatpush1.msra.mxu0 0.0
    %276 = vmatprep.subr.mxu0 0.0
    %277 = vmatpush1.msra.mxu0 0.0
    %278 = vmatprep.subr.mxu0 0.0
    %279 = vmatpush1.msra.mxu0 0.0
    %280 = vmatprep.subr.mxu0 0.0
    %281 = vmatpush1.msra.mxu0 0.0
    %282 = vmatprep.subr.mxu0 0.0
    %283 = vmatpush1.msra.mxu0 0.0
    %284 = vmatprep.subr.mxu0 0.0
    %285 = vmatpush1.msra.mxu0 0.0
    %286 = vmatprep.subr.mxu0 0.0
    %287 = vmatpush1.msra.mxu0 0.0
    %288 = vmatprep.subr.mxu0 0.0
    %289 = vmatpush1.msra.mxu0 0.0
    %290 = vmatprep.subr.mxu0 0.0
    %291 = vmatpush1.msra.mxu0 0.0
    %292 = vmatprep.subr.mxu0 0.0
    %293 = vmatpush1.msra.mxu0 0.0
    %294 = vmatprep.subr.mxu0 0.0
    %295 = vmatpush1.msra.mxu0 0.0
    %296 = vmatprep.subr.mxu0 0.0
    %297 = vmatpush1.msra.mxu0 0.0
    %298 = vmatprep.subr.mxu0 0.0
    %299 = vmatpush1.msra.mxu0 0.0
    %300 = vmatprep.subr.mxu0 0.0
    %301 = vmatpush1.msra.mxu0 0.0
    %302 = vmatprep.subr.mxu0 0.0
    %303 = vmatpush1.msra.mxu0 0.0
    %304 = vmatprep.subr.mxu0 0.0
    %305 = vmatpush1.msra.mxu0 0.0
    %306 = vmatprep.subr.mxu0 0.0
    %307 = vmatpush1.msra.mxu0 0.0
    %308 = vmatprep.subr.mxu0 0.0
    %309 = vmatpush1.msra.mxu0 0.0
    %310 = vmatprep.subr.mxu0 0.0
    %311 = vmatpush1.msra.mxu0 0.0
    %312 = vmatprep.subr.mxu0 0.0
    %313 = vmatpush1.msra.mxu0 0.0
    %314 = vmatprep.subr.mxu0 0.0
    %315 = vmatpush1.msra.mxu0 0.0
    %316 = vmatprep.subr.mxu0 0.0
    %317 = vmatpush1.msra.mxu0 0.0
    %318 = vmatprep.subr.mxu0 0.0
    %319 = vmatpush1.msra.mxu0 0.0
    %320 = vmatprep.mubr.f32.mxu0 0.0
    %321 = vmatmul.mubr.f32.gmra.mrb[0].mxu0 %v254
    %v322 = vpop.f32.mrb[0].mxu0
    %v323 = vadd.f32 %v250, %v322
    %v324 = vpop.f32.mrb[0].mxu0
    %325 = vdwg.mxu0
    %v326 = vmax.f32 %v323, 0.0
    %v327 = vld [vmem:[%s7] sm:$0x1]
    %v328 = vld [vmem:[#allocation2] sm:$0x1]
    %330 = vset.pattern.permute.xlu0 0
    %331 = vperm.xlu0 %330, %v328
    %v332 = vpop.permute.xlu0 %331
    %v334 = vlaneseq
    %v335 = vshrl.u32 %v334, 7
    %v336 = vsub.s32 0, %v335
    %v337 = vrot.slane %v332, %v336
    %v339 = vsel %vm252, %v327, 0
    %v342 = vsel %vm252, %v326, 0
    %344 = vmatprep.subr.mxu0 0.0
    %345 = vmatpush1.xpose.msra.mxu0 %v342
    %346 = vmatprep.subr.mxu0 0.0
    %347 = vmatpush1.xpose.msra.mxu0 0.0
    %348 = vmatprep.subr.mxu0 0.0
    %349 = vmatpush1.xpose.msra.mxu0 0.0
    %350 = vmatprep.subr.mxu0 0.0
    %351 = vmatpush1.xpose.msra.mxu0 0.0
    %352 = vmatprep.subr.mxu0 0.0
    %353 = vmatpush1.xpose.msra.mxu0 0.0
    %354 = vmatprep.subr.mxu0 0.0
    %355 = vmatpush1.xpose.msra.mxu0 0.0
    %356 = vmatprep.subr.mxu0 0.0
    %357 = vmatpush1.xpose.msra.mxu0 0.0
    %358 = vmatprep.subr.mxu0 0.0
    %359 = vmatpush1.xpose.msra.mxu0 0.0
    %360 = vmatprep.subr.mxu0 0.0
    %361 = vmatpush1.xpose.msra.mxu0 0.0
    %362 = vmatprep.subr.mxu0 0.0
    %363 = vmatpush1.xpose.msra.mxu0 0.0
    %364 = vmatprep.subr.mxu0 0.0
    %365 = vmatpush1.xpose.msra.mxu0 0.0
    %366 = vmatprep.subr.mxu0 0.0
    %367 = vmatpush1.xpose.msra.mxu0 0.0
    %368 = vmatprep.subr.mxu0 0.0
    %369 = vmatpush1.xpose.msra.mxu0 0.0
    %370 = vmatprep.subr.mxu0 0.0
    %371 = vmatpush1.xpose.msra.mxu0 0.0
    %372 = vmatprep.subr.mxu0 0.0
    %373 = vmatpush1.xpose.msra.mxu0 0.0
    %374 = vmatprep.subr.mxu0 0.0
    %375 = vmatpush1.xpose.msra.mxu0 0.0
    %376 = vmatprep.subr.mxu0 0.0
    %377 = vmatpush1.xpose.msra.mxu0 0.0
    %378 = vmatprep.subr.mxu0 0.0
    %379 = vmatpush1.xpose.msra.mxu0 0.0
    %380 = vmatprep.subr.mxu0 0.0
    %381 = vmatpush1.xpose.msra.mxu0 0.0
    %382 = vmatprep.subr.mxu0 0.0
    %383 = vmatpush1.xpose.msra.mxu0 0.0
    %384 = vmatprep.subr.mxu0 0.0
    %385 = vmatpush1.xpose.msra.mxu0 0.0
    %386 = vmatprep.subr.mxu0 0.0
    %387 = vmatpush1.xpose.msra.mxu0 0.0
    %388 = vmatprep.subr.mxu0 0.0
    %389 = vmatpush1.xpose.msra.mxu0 0.0
    %390 = vmatprep.subr.mxu0 0.0
    %391 = vmatpush1.xpose.msra.mxu0 0.0
    %392 = vmatprep.subr.mxu0 0.0
    %393 = vmatpush1.xpose.msra.mxu0 0.0
    %394 = vmatprep.subr.mxu0 0.0
    %395 = vmatpush1.xpose.msra.mxu0 0.0
    %396 = vmatprep.subr.mxu0 0.0
    %397 = vmatpush1.xpose.msra.mxu0 0.0
    %398 = vmatprep.subr.mxu0 0.0
    %399 = vmatpush1.xpose.msra.mxu0 0.0
    %400 = vmatprep.subr.mxu0 0.0
    %401 = vmatpush1.xpose.msra.mxu0 0.0
    %402 = vmatprep.subr.mxu0 0.0
    %403 = vmatpush1.xpose.msra.mxu0 0.0
    %404 = vmatprep.subr.mxu0 0.0
    %405 = vmatpush1.xpose.msra.mxu0 0.0
    %406 = vmatprep.subr.mxu0 0.0
    %407 = vmatpush1.xpose.msra.mxu0 0.0
    %408 = vmatprep.mubr.f32.mxu0 0.0
    %409 = vmatmul.mubr.f32.gmra.mrb[0].mxu0 %v339
    %v410 = vpop.f32.mrb[0].mxu0
    %v411 = vadd.f32 %v337, %v410
    %v412 = vpop.f32.mrb[0].mxu0
    %413 = vdwg.mxu0
    %vm414 = vcmask 57344
    %415 = vst.msk [vmem:[#allocation9] sm:$0x1] %vm414, %v411
    // Predicated region
    $region50: #{tpu_custom_call.1} parent=1 // pred_check
      _
    $region51: #{tpu_custom_call.1} parent=1 // pred_check_branch
      %417 = sbr.rel (0) target = $region53
    $region52: #{tpu_custom_call.1} parent=1 // pred_region
      %s419 = ssub.s32 16, 16
      %420 = vsyncadd [#allocation5], %s419
      %s422 = sshll.u32 [#allocation9], 4
      %s423 = int_to_ptr.vmem [resolvable:$true] %s422
      %425 = dma.vmem_to_hbm [thread:$0]  %s423, 16, %s9, [#allocation5]
    $region53: #{tpu_custom_call.1} parent=1 // pred_fallthru
      _
    // Predicated region
    $region54: #{tpu_custom_call.1} parent=1 // pred_check
      _
    $region55: #{tpu_custom_call.1} parent=1 // pred_check_branch
      %427 = sbr.rel (0) target = $region57
    $region56: #{tpu_custom_call.1} parent=1 // pred_region
      %428 = dma.done [#allocation5], 16
    $region57: #{tpu_custom_call.1} parent=1 // pred_fallthru
      _
    %429 = vsyncpa [#allocation4], 1
    %430 = vsyncpa [#allocation7], 1
    %431 = vsyncpa [#allocation5], 1

</llo_original>
